<compile_context>
chip_gen: v5e
topology: v5e:2x2
jax: 0.10.0
libtpu: 0.0.40
codegen_flags: <defaults>
</compile_context>

<pallas_src>
import jax
import jax.numpy as jnp
from jax import lax
from jax.experimental import pallas as pl
from jax.experimental.pallas import tpu as pltpu
import numpy as np

# ---- model config (small shapes consistent with the module) ----
VOCAB_SIZE  = 32
EMBED_DIM   = 32
SEQ_LEN     = 16
NUM_CLASSES = 3
BATCH       = 2
C1, C2      = 64, 128
L1 = SEQ_LEN // 2      # after pool1
L2 = L1 // 2           # after pool2 (== conv_output_length)
OUT_PAD = 128          # lane-dense padded logits width (sliced to NUM_CLASSES outside)


def _conv_relu_pool(x, w, b, L):
    """Fused-batch Conv1d(k=3, pad=1) + ReLU + MaxPool1d(2, 2).

    x: (R, Cin) with R = B*L (samples stacked along rows),
    w: (3*Cin, Cout) -- taps [k=-1, k=0, k=+1] concatenated along rows,
    b: (1, Cout).  Returns (R//2, Cout).
    """
    R, Cin = x.shape
    zero_row = jnp.zeros((1, Cin), jnp.float32)
    x_m1 = jnp.concatenate([zero_row, x[:R - 1, :]], axis=0)   # x[l-1]
    x_p1 = jnp.concatenate([x[1:, :], zero_row], axis=0)       # x[l+1]
    # Mask shifted rows at sample boundaries so conv padding does not leak
    # between samples of the fused batch.
    pos = lax.broadcasted_iota(jnp.int32, (R, 1), 0) % L
    x_m1 = jnp.where(pos == 0, 0.0, x_m1)
    x_p1 = jnp.where(pos == L - 1, 0.0, x_p1)
    # Single MXU matmul for all three taps (deeper contraction, 1 push instead of 3).
    xc = jnp.concatenate([x_m1, x, x_p1], axis=1)              # (R, 3*Cin)
    y = jnp.dot(xc, w, preferred_element_type=jnp.float32) + b
    y = jnp.maximum(y, 0.0)                                    # (R, Cout)
    # MaxPool(2,2) along the length axis: one reshape + one max (pairs never
    # cross a sample boundary because L is even).
    Cout = y.shape[1]
    return jnp.max(y.reshape(R // 2, 2, Cout), axis=1)         # (R//2, Cout)


def ecn_kernel(ids_ref, emb_ref, w1_ref, b1_ref, w2_ref, b2_ref,
               wf1_ref, bf1_ref, wf2_ref, bf2_ref, out_ref):
    R = BATCH * SEQ_LEN
    ids = ids_ref[...]                                         # (R, 1) int32
    # nn.Embedding lookup as ONE fused one-hot matmul (padding_idx=0 semantics
    # come from row 0 of the table being zero).
    iota_v = lax.broadcasted_iota(jnp.int32, (R, VOCAB_SIZE), 1)
    onehot = (iota_v == ids).astype(jnp.float32)               # (R, V)
    x = jnp.dot(onehot, emb_ref[...],
                preferred_element_type=jnp.float32)            # (R, E)

    p1 = _conv_relu_pool(x, w1_ref[...], b1_ref[...], SEQ_LEN)  # (B*L1, C1)
    p2 = _conv_relu_pool(p1, w2_ref[...], b2_ref[...], L1)      # (B*L2, C2)

    # fc1: per-sample row-major flatten (index l*C2 + c) -> single batched matmul.
    p2f = p2.reshape(BATCH, L2 * C2)                            # (B, 512)
    h = jnp.dot(p2f, wf1_ref[...],
                preferred_element_type=jnp.float32) + bf1_ref[...]
    h = jnp.maximum(h, 0.0)                                     # (B, 128)

    # fc2 with lane-padded weights -> lane-dense (B, 128) output store.
    out_ref[...] = jnp.dot(h, wf2_ref[...],
                           preferred_element_type=jnp.float32) + bf2_ref[...]


def init_params(key):
    """Deterministic synthetic parameters (shapes implied by the module __init__)."""
    ks = jax.random.split(key, 9)
    s = 0.1
    emb = s * jax.random.normal(ks[0], (VOCAB_SIZE, EMBED_DIM), jnp.float32)
    emb = emb.at[0].set(0.0)                                   # padding_idx=0
    w1 = s * jax.random.normal(ks[1], (3, EMBED_DIM, C1), jnp.float32)
    b1 = s * jax.random.normal(ks[2], (1, C1), jnp.float32)
    w2 = s * jax.random.normal(ks[3], (3, C1, C2), jnp.float32)
    b2 = s * jax.random.normal(ks[4], (1, C2), jnp.float32)
    # fc1 weight: (L2, C2, 128) with wf1[l, c, j] == W_torch[j, c*L2 + l]
    wf1 = s * jax.random.normal(ks[5], (L2, C2, 128), jnp.float32)
    bf1 = s * jax.random.normal(ks[6], (1, 128), jnp.float32)
    wf2 = s * jax.random.normal(ks[7], (128, NUM_CLASSES), jnp.float32)
    bf2 = s * jax.random.normal(ks[8], (1, NUM_CLASSES), jnp.float32)
    return (emb, w1, b1, w2, b2, wf1, bf1, wf2, bf2)


@jax.jit
def embedding_conv_net(ids, params):
    emb, w1, b1, w2, b2, wf1, bf1, wf2, bf2 = params
    B, L = ids.shape
    ids_rows = ids.reshape(B * L, 1).astype(jnp.int32)         # samples stacked on rows
    # Trace-time (free) weight re-layouts feeding the single fused matmuls.
    w1c  = w1.reshape(3 * EMBED_DIM, C1)                       # taps stacked along rows
    w2c  = w2.reshape(3 * C1, C2)
    wf1f = wf1.reshape(L2 * C2, 128)                           # row index l*C2 + c
    wf2p = jnp.zeros((128, OUT_PAD), jnp.float32).at[:, :NUM_CLASSES].set(wf2)
    bf2p = jnp.zeros((1, OUT_PAD), jnp.float32).at[:, :NUM_CLASSES].set(bf2)
    args = (ids_rows, emb, w1c, b1, w2c, b2, wf1f, bf1, wf2p, bf2p)
    vmem = pl.BlockSpec(memory_space=pltpu.MemorySpace.VMEM)
    # TODO(synk): at large BATCH, add a grid over batch tiles with
    # dimension_semantics=("parallel",) so v7x's two TensorCores split the work.
    out = pl.pallas_call(
        ecn_kernel,
        out_shape=jax.ShapeDtypeStruct((B, OUT_PAD), jnp.float32),
        in_specs=[vmem] * len(args),
        out_specs=vmem,
    )(*args)
    return out[:, :NUM_CLASSES]


def reference(ids, params):
    """Pure-JAX reference mirroring the PyTorch forward (NCL conv layout)."""
    emb, w1, b1, w2, b2, wf1, bf1, wf2, bf2 = params
    x = jnp.take(emb, ids, axis=0)                    # (B, L, E)
    x = jnp.transpose(x, (0, 2, 1))                   # (B, E, L)  == permute(0,2,1)

    def conv_relu_pool(x, w, b):
        w_oik = jnp.transpose(w, (2, 1, 0))           # (Cout, Cin, K) torch layout
        y = lax.conv_general_dilated(x, w_oik, (1,), [(1, 1)],
                                     dimension_numbers=('NCH', 'OIH', 'NCH'))
        y = jnp.maximum(y + b.reshape(1, -1, 1), 0.0)
        Bq, C, L = y.shape
        return jnp.max(y.reshape(Bq, C, L // 2, 2), axis=-1)

    x = conv_relu_pool(x, w1, b1)
    x = conv_relu_pool(x, w2, b2)                     # (B, C2, L2)
    xf = x.reshape(x.shape[0], -1)                    # torch .view(B, -1): channel-major
    Wf1 = jnp.transpose(wf1, (1, 0, 2)).reshape(C2 * L2, 128)  # rows indexed c*L2 + l
    h = jnp.maximum(xf @ Wf1 + bf1, 0.0)
    return h @ wf2 + bf2


if __name__ == "__main__":
    key = jax.random.PRNGKey(0)
    k_ids, k_par = jax.random.split(key)
    params = init_params(k_par)
    ids = jax.random.randint(k_ids, (BATCH, SEQ_LEN), 0, VOCAB_SIZE, dtype=jnp.int32)

    out = embedding_conv_net(ids, params)
    out = jax.block_until_ready(out)

    ref = reference(ids, params)
    np.testing.assert_allclose(np.asarray(out), np.asarray(ref), rtol=1e-4, atol=1e-4)
    print("KERNEL_OK")
</pallas_src>

<mosaic_0001>
module attributes {stable_mosaic.version = 11 : i64} {
  func.func @ecn_kernel(%arg0: memref<32x1xi32, #tpu.memory_space<vmem>>, %arg1: memref<32x32xf32, #tpu.memory_space<vmem>>, %arg2: memref<96x64xf32, #tpu.memory_space<vmem>>, %arg3: memref<1x64xf32, #tpu.memory_space<vmem>>, %arg4: memref<192x128xf32, #tpu.memory_space<vmem>>, %arg5: memref<1x128xf32, #tpu.memory_space<vmem>>, %arg6: memref<512x128xf32, #tpu.memory_space<vmem>>, %arg7: memref<1x128xf32, #tpu.memory_space<vmem>>, %arg8: memref<128x128xf32, #tpu.memory_space<vmem>>, %arg9: memref<1x128xf32, #tpu.memory_space<vmem>>, %arg10: memref<2x128xf32, #tpu.memory_space<vmem>>) attributes {dimension_semantics = [], scalar_prefetch = 0 : i64, scratch_operands = 0 : i64, tpu.core_type = #tpu.core_type<tc>} {
    %c0 = arith.constant 0 : index
    %c0_0 = arith.constant 0 : index
    %0 = vector.load %arg0[%c0, %c0_0] : memref<32x1xi32, #tpu.memory_space<vmem>>, vector<32x1xi32>
    %1 = tpu.iota {dimensions = array<i32: 1>} : vector<32x32xi32>
    %2 = vector.broadcast %0 : vector<32x1xi32> to vector<32x32xi32>
    %3 = arith.cmpi eq, %1, %2 : vector<32x32xi32>
    %4 = arith.extui %3 : vector<32x32xi1> to vector<32x32xi32>
    %5 = arith.sitofp %4 : vector<32x32xi32> to vector<32x32xf32>
    %c0_1 = arith.constant 0 : index
    %c0_2 = arith.constant 0 : index
    %6 = vector.load %arg1[%c0_1, %c0_2] : memref<32x32xf32, #tpu.memory_space<vmem>>, vector<32x32xf32>
    %cst = arith.constant dense<0.000000e+00> : vector<32x32xf32>
    %7 = tpu.matmul %5, %6, %cst {dimension_numbers = #tpu.dot_dimension_numbers<[1], [0], [0], [1], [0, 0, 1, 1], [], []>} : vector<32x32xf32>, vector<32x32xf32>, vector<32x32xf32> -> vector<32x32xf32>
    %c0_3 = arith.constant 0 : index
    %c0_4 = arith.constant 0 : index
    %8 = vector.load %arg2[%c0_3, %c0_4] : memref<96x64xf32, #tpu.memory_space<vmem>>, vector<96x64xf32>
    %c0_5 = arith.constant 0 : index
    %c0_6 = arith.constant 0 : index
    %9 = vector.load %arg3[%c0_5, %c0_6] : memref<1x64xf32, #tpu.memory_space<vmem>>, vector<1x64xf32>
    %cst_7 = arith.constant 0.000000e+00 : f32
    %10 = vector.broadcast %cst_7 : f32 to vector<1x32xf32>
    %11 = vector.extract_strided_slice %7 {offsets = [0, 0], sizes = [31, 32], strides = [1, 1]} : vector<32x32xf32> to vector<31x32xf32>
    %12 = tpu.concatenate %10, %11 in 0 : vector<1x32xf32>, vector<31x32xf32> -> vector<32x32xf32>
    %13 = vector.extract_strided_slice %7 {offsets = [1, 0], sizes = [31, 32], strides = [1, 1]} : vector<32x32xf32> to vector<31x32xf32>
    %14 = tpu.concatenate %13, %10 in 0 : vector<31x32xf32>, vector<1x32xf32> -> vector<32x32xf32>
    %15 = tpu.iota {dimensions = array<i32: 0>} : vector<32x1xi32>
    %c16_i32 = arith.constant 16 : i32
    %c0_i32 = arith.constant 0 : i32
    %16 = arith.cmpi eq, %c16_i32, %c0_i32 : i32
    %c1_i32 = arith.constant 1 : i32
    %17 = arith.select %16, %c1_i32, %c16_i32 : i32
    %18 = vector.broadcast %17 : i32 to vector<32x1xi32>
    %19 = arith.remsi %15, %18 : vector<32x1xi32>
    %c0_i32_8 = arith.constant 0 : i32
    %20 = vector.broadcast %c0_i32_8 : i32 to vector<32x1xi32>
    %21 = arith.cmpi ne, %19, %20 : vector<32x1xi32>
    %c0_i32_9 = arith.constant 0 : i32
    %22 = vector.broadcast %c0_i32_9 : i32 to vector<32x1xi32>
    %23 = arith.cmpi slt, %19, %22 : vector<32x1xi32>
    %c0_i32_10 = arith.constant 0 : i32
    %24 = arith.cmpi slt, %17, %c0_i32_10 : i32
    %25 = vector.broadcast %24 : i1 to vector<32x1xi1>
    %26 = vector.broadcast %25 : vector<32x1xi1> to vector<32x1xi1>
    %27 = arith.xori %23, %26 : vector<32x1xi1>
    %28 = arith.andi %27, %21 : vector<32x1xi1>
    %29 = vector.broadcast %17 : i32 to vector<32x1xi32>
    %30 = arith.addi %19, %29 : vector<32x1xi32>
    %31 = arith.select %28, %30, %19 : vector<32x1xi1>, vector<32x1xi32>
    %c0_i32_11 = arith.constant 0 : i32
    %32 = vector.broadcast %c0_i32_11 : i32 to vector<32x1xi32>
    %33 = arith.cmpi eq, %31, %32 : vector<32x1xi32>
    %cst_12 = arith.constant 0.000000e+00 : f32
    %34 = vector.shape_cast %33 : vector<32x1xi1> to vector<32x1xi1>
    %35 = vector.broadcast %34 : vector<32x1xi1> to vector<32x32xi1>
    %36 = vector.broadcast %cst_12 : f32 to vector<32x32xf32>
    %37 = arith.select %35, %36, %12 : vector<32x32xi1>, vector<32x32xf32>
    %c15_i32 = arith.constant 15 : i32
    %38 = vector.broadcast %c15_i32 : i32 to vector<32x1xi32>
    %39 = arith.cmpi eq, %31, %38 : vector<32x1xi32>
    %cst_13 = arith.constant 0.000000e+00 : f32
    %40 = vector.shape_cast %39 : vector<32x1xi1> to vector<32x1xi1>
    %41 = vector.broadcast %40 : vector<32x1xi1> to vector<32x32xi1>
    %42 = vector.broadcast %cst_13 : f32 to vector<32x32xf32>
    %43 = arith.select %41, %42, %14 : vector<32x32xi1>, vector<32x32xf32>
    %44 = tpu.concatenate %37, %7, %43 in 1 : vector<32x32xf32>, vector<32x32xf32>, vector<32x32xf32> -> vector<32x96xf32>
    %cst_14 = arith.constant dense<0.000000e+00> : vector<32x64xf32>
    %45 = tpu.matmul %44, %8, %cst_14 {dimension_numbers = #tpu.dot_dimension_numbers<[1], [0], [0], [1], [0, 0, 1, 1], [], []>} : vector<32x96xf32>, vector<96x64xf32>, vector<32x64xf32> -> vector<32x64xf32>
    %46 = vector.broadcast %9 : vector<1x64xf32> to vector<32x64xf32>
    %47 = arith.addf %45, %46 : vector<32x64xf32>
    %cst_15 = arith.constant 0.000000e+00 : f32
    %48 = vector.broadcast %cst_15 : f32 to vector<32x64xf32>
    %49 = arith.maximumf %47, %48 : vector<32x64xf32>
    %50 = vector.shape_cast %49 : vector<32x64xf32> to vector<16x2x64xf32>
    %cst_16 = arith.constant dense<0xFF800000> : vector<16x64xf32>
    %51 = vector.multi_reduction <maximumf>, %50, %cst_16 [1] : vector<16x2x64xf32> to vector<16x64xf32>
    %c0_17 = arith.constant 0 : index
    %c0_18 = arith.constant 0 : index
    %52 = vector.load %arg4[%c0_17, %c0_18] : memref<192x128xf32, #tpu.memory_space<vmem>>, vector<192x128xf32>
    %c0_19 = arith.constant 0 : index
    %c0_20 = arith.constant 0 : index
    %53 = vector.load %arg5[%c0_19, %c0_20] : memref<1x128xf32, #tpu.memory_space<vmem>>, vector<1x128xf32>
    %cst_21 = arith.constant 0.000000e+00 : f32
    %54 = vector.broadcast %cst_21 : f32 to vector<1x64xf32>
    %55 = vector.extract_strided_slice %51 {offsets = [0, 0], sizes = [15, 64], strides = [1, 1]} : vector<16x64xf32> to vector<15x64xf32>
    %56 = tpu.concatenate %54, %55 in 0 : vector<1x64xf32>, vector<15x64xf32> -> vector<16x64xf32>
    %57 = vector.extract_strided_slice %51 {offsets = [1, 0], sizes = [15, 64], strides = [1, 1]} : vector<16x64xf32> to vector<15x64xf32>
    %58 = tpu.concatenate %57, %54 in 0 : vector<15x64xf32>, vector<1x64xf32> -> vector<16x64xf32>
    %59 = tpu.iota {dimensions = array<i32: 0>} : vector<16x1xi32>
    %c8_i32 = arith.constant 8 : i32
    %c0_i32_22 = arith.constant 0 : i32
    %60 = arith.cmpi eq, %c8_i32, %c0_i32_22 : i32
    %c1_i32_23 = arith.constant 1 : i32
    %61 = arith.select %60, %c1_i32_23, %c8_i32 : i32
    %62 = vector.broadcast %61 : i32 to vector<16x1xi32>
    %63 = arith.remsi %59, %62 : vector<16x1xi32>
    %c0_i32_24 = arith.constant 0 : i32
    %64 = vector.broadcast %c0_i32_24 : i32 to vector<16x1xi32>
    %65 = arith.cmpi ne, %63, %64 : vector<16x1xi32>
    %c0_i32_25 = arith.constant 0 : i32
    %66 = vector.broadcast %c0_i32_25 : i32 to vector<16x1xi32>
    %67 = arith.cmpi slt, %63, %66 : vector<16x1xi32>
    %c0_i32_26 = arith.constant 0 : i32
    %68 = arith.cmpi slt, %61, %c0_i32_26 : i32
    %69 = vector.broadcast %68 : i1 to vector<16x1xi1>
    %70 = vector.broadcast %69 : vector<16x1xi1> to vector<16x1xi1>
    %71 = arith.xori %67, %70 : vector<16x1xi1>
    %72 = arith.andi %71, %65 : vector<16x1xi1>
    %73 = vector.broadcast %61 : i32 to vector<16x1xi32>
    %74 = arith.addi %63, %73 : vector<16x1xi32>
    %75 = arith.select %72, %74, %63 : vector<16x1xi1>, vector<16x1xi32>
    %c0_i32_27 = arith.constant 0 : i32
    %76 = vector.broadcast %c0_i32_27 : i32 to vector<16x1xi32>
    %77 = arith.cmpi eq, %75, %76 : vector<16x1xi32>
    %cst_28 = arith.constant 0.000000e+00 : f32
    %78 = vector.shape_cast %77 : vector<16x1xi1> to vector<16x1xi1>
    %79 = vector.broadcast %78 : vector<16x1xi1> to vector<16x64xi1>
    %80 = vector.broadcast %cst_28 : f32 to vector<16x64xf32>
    %81 = arith.select %79, %80, %56 : vector<16x64xi1>, vector<16x64xf32>
    %c7_i32 = arith.constant 7 : i32
    %82 = vector.broadcast %c7_i32 : i32 to vector<16x1xi32>
    %83 = arith.cmpi eq, %75, %82 : vector<16x1xi32>
    %cst_29 = arith.constant 0.000000e+00 : f32
    %84 = vector.shape_cast %83 : vector<16x1xi1> to vector<16x1xi1>
    %85 = vector.broadcast %84 : vector<16x1xi1> to vector<16x64xi1>
    %86 = vector.broadcast %cst_29 : f32 to vector<16x64xf32>
    %87 = arith.select %85, %86, %58 : vector<16x64xi1>, vector<16x64xf32>
    %88 = tpu.concatenate %81, %51, %87 in 1 : vector<16x64xf32>, vector<16x64xf32>, vector<16x64xf32> -> vector<16x192xf32>
    %cst_30 = arith.constant dense<0.000000e+00> : vector<16x128xf32>
    %89 = tpu.matmul %88, %52, %cst_30 {dimension_numbers = #tpu.dot_dimension_numbers<[1], [0], [0], [1], [0, 0, 1, 1], [], []>} : vector<16x192xf32>, vector<192x128xf32>, vector<16x128xf32> -> vector<16x128xf32>
    %90 = vector.broadcast %53 : vector<1x128xf32> to vector<16x128xf32>
    %91 = arith.addf %89, %90 : vector<16x128xf32>
    %cst_31 = arith.constant 0.000000e+00 : f32
    %92 = vector.broadcast %cst_31 : f32 to vector<16x128xf32>
    %93 = arith.maximumf %91, %92 : vector<16x128xf32>
    %94 = vector.shape_cast %93 : vector<16x128xf32> to vector<8x2x128xf32>
    %cst_32 = arith.constant dense<0xFF800000> : vector<8x128xf32>
    %95 = vector.multi_reduction <maximumf>, %94, %cst_32 [1] : vector<8x2x128xf32> to vector<8x128xf32>
    %96 = vector.shape_cast %95 : vector<8x128xf32> to vector<2x512xf32>
    %c0_33 = arith.constant 0 : index
    %c0_34 = arith.constant 0 : index
    %97 = vector.load %arg6[%c0_33, %c0_34] : memref<512x128xf32, #tpu.memory_space<vmem>>, vector<512x128xf32>
    %cst_35 = arith.constant dense<0.000000e+00> : vector<2x128xf32>
    %98 = tpu.matmul %96, %97, %cst_35 {dimension_numbers = #tpu.dot_dimension_numbers<[1], [0], [0], [1], [0, 0, 1, 1], [], []>} : vector<2x512xf32>, vector<512x128xf32>, vector<2x128xf32> -> vector<2x128xf32>
    %c0_36 = arith.constant 0 : index
    %c0_37 = arith.constant 0 : index
    %99 = vector.load %arg7[%c0_36, %c0_37] : memref<1x128xf32, #tpu.memory_space<vmem>>, vector<1x128xf32>
    %100 = vector.broadcast %99 : vector<1x128xf32> to vector<2x128xf32>
    %101 = arith.addf %98, %100 : vector<2x128xf32>
    %cst_38 = arith.constant 0.000000e+00 : f32
    %102 = vector.broadcast %cst_38 : f32 to vector<2x128xf32>
    %103 = arith.maximumf %101, %102 : vector<2x128xf32>
    %c0_39 = arith.constant 0 : index
    %c0_40 = arith.constant 0 : index
    %104 = vector.load %arg8[%c0_39, %c0_40] : memref<128x128xf32, #tpu.memory_space<vmem>>, vector<128x128xf32>
    %cst_41 = arith.constant dense<0.000000e+00> : vector<2x128xf32>
    %105 = tpu.matmul %103, %104, %cst_41 {dimension_numbers = #tpu.dot_dimension_numbers<[1], [0], [0], [1], [0, 0, 1, 1], [], []>} : vector<2x128xf32>, vector<128x128xf32>, vector<2x128xf32> -> vector<2x128xf32>
    %c0_42 = arith.constant 0 : index
    %c0_43 = arith.constant 0 : index
    %106 = vector.load %arg9[%c0_42, %c0_43] : memref<1x128xf32, #tpu.memory_space<vmem>>, vector<1x128xf32>
    %107 = vector.broadcast %106 : vector<1x128xf32> to vector<2x128xf32>
    %108 = arith.addf %105, %107 : vector<2x128xf32>
    %c0_44 = arith.constant 0 : index
    %c0_45 = arith.constant 0 : index
    %109 = vector.load %arg10[%c0_44, %c0_45] : memref<2x128xf32, #tpu.memory_space<vmem>>, vector<2x128xf32>
    tpu.vector_store %arg10[%c0_44, %c0_45], %108 {strides = array<i32>} : memref<2x128xf32, #tpu.memory_space<vmem>>, vector<2x128xf32>,
    return
  }
}

</mosaic_0001>

<llo_original>
// kernel: embedding_conv_net.1
$region0: #{embedding_conv_net.1}
  #allocation0 [shape = 'u32[]', space=smem, size = 0x4, offset = 0x4, fixed_abs, tag = 'smem constant byte address 0x4 - core index']
  #allocation1 [shape = 'u32[72,128]{1,0:T(1,128)}', space=vmem, size = 0x9000, scoped, tag = 'internal scratch']
  %s0 = inlined_call_operand.vmem [shape: s32[32,1], index: 0, kind: input, shape index: {}]
  %s1 = inlined_call_operand.vmem [shape: f32[32,32], index: 1, kind: input, shape index: {}]
  %s2 = inlined_call_operand.vmem [shape: f32[96,64], index: 2, kind: input, shape index: {}]
  %s3 = inlined_call_operand.vmem [shape: f32[1,64], index: 3, kind: input, shape index: {}]
  %s4 = inlined_call_operand.hbm [shape: f32[192,128], index: 4, kind: input, shape index: {}]
  %s5 = inlined_call_operand.vmem [shape: f32[1,128], index: 5, kind: input, shape index: {}]
  %s6 = inlined_call_operand.vmem [shape: f32[512,128], index: 6, kind: input, shape index: {}]
  %s7 = inlined_call_operand.vmem [shape: f32[1,128], index: 7, kind: input, shape index: {}]
  %s8 = inlined_call_operand.vmem [shape: f32[128,128], index: 8, kind: input, shape index: {}]
  %s9 = inlined_call_operand.vmem [shape: f32[1,128], index: 9, kind: input, shape index: {}]
  %s10 = inlined_call_operand.hbm [shape: f32[2,128], index: 10, kind: output, shape index: {}]
  %s11 = sld [smem:[#allocation0]]
  $region54: #{embedding_conv_net.1} parent=0
    _
  %s13 = ssub.s32 1, %s11
  %s14 = scalar_select 0, %s13, %s11
  $region1: #{embedding_conv_net.1} parent=0
    #allocation2 [shape = 'u8[98304]{0}', space=vmem, size = 0x18000, scoped, tag = 'input window, operand 4, single buffered']
    #allocation3 [shape = 's32[1]{0}', space=sflag, size = 0x4, scoped, tag = 'scoped memory for embedding_conv_net.1']
    #allocation4 [shape = 's32[1]{0}', space=sflag, size = 0x4, scoped, tag = 'scoped memory for embedding_conv_net.1']
    #allocation5 [shape = 'u8[1024]{0}', space=vmem, size = 0x400, scoped, tag = 'output window, operand 0, single buffered']
    %15 = vsyncpa [#allocation3], 0
    %16 = vsyncpa [#allocation4], 0
    // Predicated region
    $region2: #{embedding_conv_net.1} parent=1 // pred_check
      _
    $region3: #{embedding_conv_net.1} parent=1 // pred_check_branch
      %18 = sbr.rel (0) target = $region5
    $region4: #{embedding_conv_net.1} parent=1 // pred_region
      _
    $region5: #{embedding_conv_net.1} parent=1 // pred_fallthru
      _
    // Predicated region
    $region6: #{embedding_conv_net.1} parent=1 // pred_check
      _
    $region7: #{embedding_conv_net.1} parent=1 // pred_check_branch
      %20 = sbr.rel (0) target = $region9
    $region8: #{embedding_conv_net.1} parent=1 // pred_region
      _
    $region9: #{embedding_conv_net.1} parent=1 // pred_fallthru
      _
    // Predicated region
    $region10: #{embedding_conv_net.1} parent=1 // pred_check
      _
    $region11: #{embedding_conv_net.1} parent=1 // pred_check_branch
      %22 = sbr.rel (0) target = $region13
    $region12: #{embedding_conv_net.1} parent=1 // pred_region
      _
    $region13: #{embedding_conv_net.1} parent=1 // pred_fallthru
      _
    // Predicated region
    $region14: #{embedding_conv_net.1} parent=1 // pred_check
      _
    $region15: #{embedding_conv_net.1} parent=1 // pred_check_branch
      %24 = sbr.rel (0) target = $region17
    $region16: #{embedding_conv_net.1} parent=1 // pred_region
      _
    $region17: #{embedding_conv_net.1} parent=1 // pred_fallthru
      _
    // Predicated region
    $region18: #{embedding_conv_net.1} parent=1 // pred_check
      _
    $region19: #{embedding_conv_net.1} parent=1 // pred_check_branch
      %26 = sbr.rel (0) target = $region21
    $region20: #{embedding_conv_net.1} parent=1 // pred_region
      %28 = vsyncadd [#allocation3], 0
      %s29 = sshll.u32 %s4, 4
      %s30 = int_to_ptr.hbm [resolvable:$true] %s29
      %s31 = sshll.u32 [#allocation2], 4
      %s32 = int_to_ptr.vmem [resolvable:$true] %s31
      %37 = dma.hbm_to_vmem [thread:$0]  %s30, 3072, %s32, [#allocation3], 128, 128, 8
    $region21: #{embedding_conv_net.1} parent=1 // pred_fallthru
      _
    // Predicated region
    $region22: #{embedding_conv_net.1} parent=1 // pred_check
      _
    $region23: #{embedding_conv_net.1} parent=1 // pred_check_branch
      %39 = sbr.rel (0) target = $region25
    $region24: #{embedding_conv_net.1} parent=1 // pred_region
      _
    $region25: #{embedding_conv_net.1} parent=1 // pred_fallthru
      _
    // Predicated region
    $region26: #{embedding_conv_net.1} parent=1 // pred_check
      _
    $region27: #{embedding_conv_net.1} parent=1 // pred_check_branch
      %41 = sbr.rel (0) target = $region29
    $region28: #{embedding_conv_net.1} parent=1 // pred_region
      _
    $region29: #{embedding_conv_net.1} parent=1 // pred_fallthru
      _
    // Predicated region
    $region30: #{embedding_conv_net.1} parent=1 // pred_check
      _
    $region31: #{embedding_conv_net.1} parent=1 // pred_check_branch
      %43 = sbr.rel (0) target = $region33
    $region32: #{embedding_conv_net.1} parent=1 // pred_region
      _
    $region33: #{embedding_conv_net.1} parent=1 // pred_fallthru
      _
    // Predicated region
    $region34: #{embedding_conv_net.1} parent=1 // pred_check
      _
    $region35: #{embedding_conv_net.1} parent=1 // pred_check_branch
      %45 = sbr.rel (0) target = $region37
    $region36: #{embedding_conv_net.1} parent=1 // pred_region
      _
    $region37: #{embedding_conv_net.1} parent=1 // pred_fallthru
      _
    // Predicated region
    $region38: #{embedding_conv_net.1} parent=1 // pred_check
      _
    $region39: #{embedding_conv_net.1} parent=1 // pred_check_branch
      %47 = sbr.rel (0) target = $region41
    $region40: #{embedding_conv_net.1} parent=1 // pred_region
      _
    $region41: #{embedding_conv_net.1} parent=1 // pred_fallthru
      _
    // Predicated region
    $region42: #{embedding_conv_net.1} parent=1 // pred_check
      _
    $region43: #{embedding_conv_net.1} parent=1 // pred_check_branch
      %49 = sbr.rel (0) target = $region45
    $region44: #{embedding_conv_net.1} parent=1 // pred_region
      %51 = dma.done [#allocation3], 3072
    $region45: #{embedding_conv_net.1} parent=1 // pred_fallthru
      _
    %v52 = vld [vmem:[%s0] sm:$0xff]
    %v53 = vld [vmem:[%s0 + $0x8] sm:$0xff]
    %v54 = vld [vmem:[%s0 + $0x10] sm:$0xff]
    %v55 = vld [vmem:[%s0 + $0x18] sm:$0xff]
    %v56 = vlaneseq
    %v57 = vand.u32 %v56, 127
    %58 = vset.pattern.permute.xlu0 0
    %59 = vperm.xlu0 %58, %v52
    %v60 = vpop.permute.xlu0 %59
    %61 = vset.pattern.permute.xlu0 0
    %62 = vperm.xlu0 %61, %v53
    %v63 = vpop.permute.xlu0 %62
    %64 = vset.pattern.permute.xlu0 0
    %65 = vperm.xlu0 %64, %v54
    %v66 = vpop.permute.xlu0 %65
    %67 = vset.pattern.permute.xlu0 0
    %68 = vperm.xlu0 %67, %v55
    %v69 = vpop.permute.xlu0 %68
    %vm70 = vcmp.eq.s32.totalorder %v57, %v60
    %vm71 = vcmp.eq.s32.totalorder %v57, %v63
    %vm72 = vcmp.eq.s32.totalorder %v57, %v66
    %vm73 = vcmp.eq.s32.totalorder %v57, %v69
    %v74 = vsel %vm70, 1, 0
    %v75 = vsel %vm71, 1, 0
    %v76 = vsel %vm72, 1, 0
    %v77 = vsel %vm73, 1, 0
    %v78 = vcvt.s32.f32 %v74
    %v79 = vcvt.s32.f32 %v75
    %v80 = vcvt.s32.f32 %v76
    %v81 = vcvt.s32.f32 %v77
    %v82 = vld [vmem:[%s1] sm:$0xff]
    %v83 = vld [vmem:[%s1 + $0x8] sm:$0xff]
    %v84 = vld [vmem:[%s1 + $0x10] sm:$0xff]
    %v85 = vld [vmem:[%s1 + $0x18] sm:$0xff]
    %vm86 = vcmask 261120
    %v88 = vsel %vm86, %v78, 0
    %v91 = vsel %vm86, %v79, 0
    %v94 = vsel %vm86, %v80, 0
    %v97 = vsel %vm86, %v81, 0
    %99 = vmatpush.msra.mxu0 0.0
    %100 = vmatpush.msra.mxu0 0.0
    %101 = vmatpush.msra.mxu0 0.0
    %102 = vmatpush.msra.mxu0 0.0
    %103 = vmatpush.msra.mxu0 0.0
    %104 = vmatpush.msra.mxu0 0.0
    %105 = vmatpush.msra.mxu0 0.0
    %106 = vmatpush.msra.mxu0 0.0
    %107 = vmatpush.msra.mxu0 0.0
    %108 = vmatpush.msra.mxu0 0.0
    %109 = vmatpush.msra.mxu0 0.0
    %110 = vmatpush.msra.mxu0 0.0
    %111 = vmatpush.msra.mxu0 %v85
    %112 = vmatpush.msra.mxu0 %v84
    %113 = vmatpush.msra.mxu0 %v83
    %114 = vmatpush.msra.mxu0 %v82
    %115 = vmatmul.f32.gmra.mxu0 %v88
    %v116 = vpop.f32.mrf.mxu0
    %v117 = vadd.f32 0.0, %v116
    %118 = vmatmul.f32.gmra.mxu0 %v91
    %v119 = vpop.f32.mrf.mxu0
    %v120 = vadd.f32 0.0, %v119
    %121 = vmatmul.f32.gmra.mxu0 %v94
    %v122 = vpop.f32.mrf.mxu0
    %v123 = vadd.f32 0.0, %v122
    %124 = vmatmul.f32.gmra.mxu0 %v97
    %v125 = vpop.f32.mrf.mxu0
    %v126 = vadd.f32 0.0, %v125
    %127 = vdwg.mxu0
    %v128 = vld [vmem:[%s2] sm:$0xff]
    %v129 = vld [vmem:[%s2 + $0x8] sm:$0xff]
    %v130 = vld [vmem:[%s2 + $0x10] sm:$0xff]
    %v131 = vld [vmem:[%s2 + $0x18] sm:$0xff]
    %v132 = vld [vmem:[%s2 + $0x20] sm:$0xff]
    %v133 = vld [vmem:[%s2 + $0x28] sm:$0xff]
    %v134 = vld [vmem:[%s2 + $0x30] sm:$0xff]
    %v135 = vld [vmem:[%s2 + $0x38] sm:$0xff]
    %v136 = vld [vmem:[%s2 + $0x40] sm:$0xff]
    %v137 = vld [vmem:[%s2 + $0x48] sm:$0xff]
    %v138 = vld [vmem:[%s2 + $0x50] sm:$0xff]
    %v139 = vld [vmem:[%s2 + $0x58] sm:$0xff]
    %v140 = vld [vmem:[%s3] sm:$0x1]
    %vm145 = vcmask 1040384
    %v146 = vrot.slane %v117, 7
    %v147 = vrot.slane %v120, 7
    %v148 = vsel %vm145, %v146, %v147
    %v149 = vrot.slane %v123, 7
    %v150 = vsel %vm145, %v147, %v149
    %v151 = vrot.slane %v126, 7
    %v152 = vsel %vm145, %v149, %v151
    %v157 = vsel %vm145, 0.0, %v146
    %vm158 = vcmask 1046528
    %v159 = vrot.slane %v117, 1
    %v160 = vrot.slane %v120, 1
    %v161 = vsel %vm158, %v159, %v160
    %v162 = vrot.slane %v123, 1
    %v163 = vsel %vm158, %v160, %v162
    %v164 = vrot.slane %v126, 1
    %v165 = vsel %vm158, %v162, %v164
    %v170 = vsel %vm158, %v164, 0.0
    %v171 = vlaneseq
    %v172 = vshrl.u32 %v171, 7
    %v173 = vadd.s32 %v172, 8
    %v174 = vadd.s32 %v172, 16
    %v175 = vadd.s32 %v172, 24
    %vm176 = vcmp.lt.s32.totalorder %v172, 0
    %v177 = vsub.s32 0, %v172
    %v178 = vsel %vm176, %v177, %v172
    %v179 = vshrl.u32 %v178, 4
    %v180 = vand.u32 %v178, 15
    %v181 = vsub.s32 0, %v180
    %v182 = vsel %vm176, %v181, %v180
    %vm183 = vcmp.lt.s32.totalorder %v173, 0
    %v184 = vsub.s32 0, %v173
    %v185 = vsel %vm183, %v184, %v173
    %v186 = vshrl.u32 %v185, 4
    %v187 = vand.u32 %v185, 15
    %v188 = vsub.s32 0, %v187
    %v189 = vsel %vm183, %v188, %v187
    %vm190 = vcmp.lt.s32.totalorder %v174, 0
    %v191 = vsub.s32 0, %v174
    %v192 = vsel %vm190, %v191, %v174
    %v193 = vshrl.u32 %v192, 4
    %v194 = vand.u32 %v192, 15
    %v195 = vsub.s32 0, %v194
    %v196 = vsel %vm190, %v195, %v194
    %vm197 = vcmp.lt.s32.totalorder %v175, 0
    %v198 = vsub.s32 0, %v175
    %v199 = vsel %vm197, %v198, %v175
    %v200 = vshrl.u32 %v199, 4
    %v201 = vand.u32 %v199, 15
    %v202 = vsub.s32 0, %v201
    %v203 = vsel %vm197, %v202, %v201
    %vm204 = vcmp.ne.s32.totalorder %v182, 0
    %vm205 = vcmp.ne.s32.totalorder %v189, 0
    %vm206 = vcmp.ne.s32.totalorder %v196, 0
    %vm207 = vcmp.ne.s32.totalorder %v203, 0
    %vm208 = vcmp.lt.s32.totalorder %v182, 0
    %vm209 = vcmp.lt.s32.totalorder %v189, 0
    %vm210 = vcmp.lt.s32.totalorder %v196, 0
    %vm211 = vcmp.lt.s32.totalorder %v203, 0
    %vm212 = vmand %vm208, %vm204
    %vm213 = vmand %vm209, %vm205
    %vm214 = vmand %vm210, %vm206
    %vm215 = vmand %vm211, %vm207
    %v216 = vadd.s32 %v182, 16
    %v217 = vadd.s32 %v189, 16
    %v218 = vadd.s32 %v196, 16
    %v219 = vadd.s32 %v203, 16
    %v220 = vsel %vm212, %v216, %v182
    %v221 = vsel %vm213, %v217, %v189
    %v222 = vsel %vm214, %v218, %v196
    %v223 = vsel %vm215, %v219, %v203
    %vm224 = vcmp.eq.s32.totalorder %v220, 0
    %vm225 = vcmp.eq.s32.totalorder %v221, 0
    %vm226 = vcmp.eq.s32.totalorder %v222, 0
    %vm227 = vcmp.eq.s32.totalorder %v223, 0
    %v228 = vsel %vm224, 1, 0
    %v229 = vsel %vm225, 1, 0
    %v230 = vsel %vm226, 1, 0
    %v231 = vsel %vm227, 1, 0
    %vm232 = vcmp.eq.s32.totalorder %v228, 1
    %vm233 = vcmp.eq.s32.totalorder %v229, 1
    %vm234 = vcmp.eq.s32.totalorder %v230, 1
    %vm235 = vcmp.eq.s32.totalorder %v231, 1
    %v236 = vsel %vm232, 0.0, %v157
    %v237 = vsel %vm233, 0.0, %v148
    %v238 = vsel %vm234, 0.0, %v150
    %v239 = vsel %vm235, 0.0, %v152
    %vm240 = vcmp.eq.s32.totalorder %v220, 15
    %vm241 = vcmp.eq.s32.totalorder %v221, 15
    %vm242 = vcmp.eq.s32.totalorder %v222, 15
    %vm243 = vcmp.eq.s32.totalorder %v223, 15
    %v244 = vsel %vm240, 1, 0
    %v245 = vsel %vm241, 1, 0
    %v246 = vsel %vm242, 1, 0
    %v247 = vsel %vm243, 1, 0
    %vm248 = vcmp.eq.s32.totalorder %v244, 1
    %vm249 = vcmp.eq.s32.totalorder %v245, 1
    %vm250 = vcmp.eq.s32.totalorder %v246, 1
    %vm251 = vcmp.eq.s32.totalorder %v247, 1
    %v252 = vsel %vm248, 0.0, %v161
    %v253 = vsel %vm249, 0.0, %v163
    %v254 = vsel %vm250, 0.0, %v165
    %v255 = vsel %vm251, 0.0, %v170
    %256 = vrot.lane.b32.xlu0 %v117, 32
    %v257 = vpop.permute.xlu0 %256
    %258 = vrot.lane.b32.xlu0 %v120, 32
    %v259 = vpop.permute.xlu0 %258
    %260 = vrot.lane.b32.xlu0 %v123, 32
    %v261 = vpop.permute.xlu0 %260
    %262 = vrot.lane.b32.xlu0 %v126, 32
    %v263 = vpop.permute.xlu0 %262
    %272 = vrot.lane.b32.xlu0 %v252, 64
    %v273 = vpop.permute.xlu0 %272
    %274 = vrot.lane.b32.xlu0 %v253, 64
    %v275 = vpop.permute.xlu0 %274
    %276 = vrot.lane.b32.xlu0 %v254, 64
    %v277 = vpop.permute.xlu0 %276
    %278 = vrot.lane.b32.xlu0 %v255, 64
    %v279 = vpop.permute.xlu0 %278
    %v284 = vsel %vm86, %v236, %v257
    %v285 = vsel %vm86, %v237, %v259
    %v286 = vsel %vm86, %v238, %v261
    %v287 = vsel %vm86, %v239, %v263
    %vm288 = vcmask 523264
    %v289 = vsel %vm288, %v284, %v273
    %v290 = vsel %vm288, %v285, %v275
    %v291 = vsel %vm288, %v286, %v277
    %v292 = vsel %vm288, %v287, %v279
    %v294 = vperm.slane %v140, 0
    %vm296 = vcmask 785408
    %v298 = vsel %vm296, %v289, 0
    %v301 = vsel %vm296, %v290, 0
    %v304 = vsel %vm296, %v291, 0
    %v307 = vsel %vm296, %v292, 0
    %309 = vmatpush.msra.mxu0 0.0
    %310 = vmatpush.msra.mxu0 0.0
    %311 = vmatpush.msra.mxu0 0.0
    %312 = vmatpush.msra.mxu0 0.0
    %313 = vmatpush.msra.mxu0 %v139
    %314 = vmatpush.msra.mxu0 %v138
    %315 = vmatpush.msra.mxu0 %v137
    %316 = vmatpush.msra.mxu0 %v136
    %317 = vmatpush.msra.mxu0 %v135
    %318 = vmatpush.msra.mxu0 %v134
    %319 = vmatpush.msra.mxu0 %v133
    %320 = vmatpush.msra.mxu0 %v132
    %321 = vmatpush.msra.mxu0 %v131
    %322 = vmatpush.msra.mxu0 %v130
    %323 = vmatpush.msra.mxu0 %v129
    %324 = vmatpush.msra.mxu0 %v128
    %325 = vmatmul.f32.gmra.mxu0 %v298
    %v326 = vpop.f32.mrf.mxu0
    %v327 = vadd.f32 %v294, %v326
    %328 = vmatmul.f32.gmra.mxu0 %v301
    %v329 = vpop.f32.mrf.mxu0
    %v330 = vadd.f32 %v294, %v329
    %331 = vmatmul.f32.gmra.mxu0 %v304
    %v332 = vpop.f32.mrf.mxu0
    %v333 = vadd.f32 %v294, %v332
    %334 = vmatmul.f32.gmra.mxu0 %v307
    %v335 = vpop.f32.mrf.mxu0
    %v336 = vadd.f32 %v294, %v335
    %337 = vdwg.mxu0
    %v338 = vmax.f32 %v327, 0.0
    %v339 = vmax.f32 %v330, 0.0
    %v340 = vmax.f32 %v333, 0.0
    %v341 = vmax.f32 %v336, 0.0
    %v346 = vrot.slane %v338, 2
    %v347 = vrot.slane %v338, 4
    %v348 = vrot.slane %v338, 6
    %v349 = vrot.slane %v339, 2
    %v350 = vrot.slane %v339, 4
    %v351 = vrot.slane %v339, 6
    %v352 = vrot.slane %v340, 2
    %v353 = vrot.slane %v340, 4
    %v354 = vrot.slane %v340, 6
    %v355 = vrot.slane %v341, 2
    %v356 = vrot.slane %v341, 4
    %v357 = vrot.slane %v341, 6
    %vm370 = vcmask 517120
    %v371 = vsel %vm370, %v338, -inf
    %v372 = vrot.slane %v371, 4
    %v373 = vmax.f32 %v371, %v372
    %v374 = vrot.slane %v373, 2
    %v375 = vmax.f32 %v373, %v374
    %v376 = vrot.slane %v375, 1
    %v377 = vmax.f32 %v375, %v376
    %v378 = vsel %vm370, %v346, -inf
    %v379 = vrot.slane %v378, 4
    %v380 = vmax.f32 %v378, %v379
    %v381 = vrot.slane %v380, 2
    %v382 = vmax.f32 %v380, %v381
    %v383 = vrot.slane %v382, 1
    %v384 = vmax.f32 %v382, %v383
    %v385 = vsel %vm370, %v347, -inf
    %v386 = vrot.slane %v385, 4
    %v387 = vmax.f32 %v385, %v386
    %v388 = vrot.slane %v387, 2
    %v389 = vmax.f32 %v387, %v388
    %v390 = vrot.slane %v389, 1
    %v391 = vmax.f32 %v389, %v390
    %v392 = vsel %vm370, %v348, -inf
    %v393 = vrot.slane %v392, 4
    %v394 = vmax.f32 %v392, %v393
    %v395 = vrot.slane %v394, 2
    %v396 = vmax.f32 %v394, %v395
    %v397 = vrot.slane %v396, 1
    %v398 = vmax.f32 %v396, %v397
    %v399 = vsel %vm370, %v339, -inf
    %v400 = vrot.slane %v399, 4
    %v401 = vmax.f32 %v399, %v400
    %v402 = vrot.slane %v401, 2
    %v403 = vmax.f32 %v401, %v402
    %v404 = vrot.slane %v403, 1
    %v405 = vmax.f32 %v403, %v404
    %v406 = vsel %vm370, %v349, -inf
    %v407 = vrot.slane %v406, 4
    %v408 = vmax.f32 %v406, %v407
    %v409 = vrot.slane %v408, 2
    %v410 = vmax.f32 %v408, %v409
    %v411 = vrot.slane %v410, 1
    %v412 = vmax.f32 %v410, %v411
    %v413 = vsel %vm370, %v350, -inf
    %v414 = vrot.slane %v413, 4
    %v415 = vmax.f32 %v413, %v414
    %v416 = vrot.slane %v415, 2
    %v417 = vmax.f32 %v415, %v416
    %v418 = vrot.slane %v417, 1
    %v419 = vmax.f32 %v417, %v418
    %v420 = vsel %vm370, %v351, -inf
    %v421 = vrot.slane %v420, 4
    %v422 = vmax.f32 %v420, %v421
    %v423 = vrot.slane %v422, 2
    %v424 = vmax.f32 %v422, %v423
    %v425 = vrot.slane %v424, 1
    %v426 = vmax.f32 %v424, %v425
    %v427 = vsel %vm370, %v340, -inf
    %v428 = vrot.slane %v427, 4
    %v429 = vmax.f32 %v427, %v428
    %v430 = vrot.slane %v429, 2
    %v431 = vmax.f32 %v429, %v430
    %v432 = vrot.slane %v431, 1
    %v433 = vmax.f32 %v431, %v432
    %v434 = vsel %vm370, %v352, -inf
    %v435 = vrot.slane %v434, 4
    %v436 = vmax.f32 %v434, %v435
    %v437 = vrot.slane %v436, 2
    %v438 = vmax.f32 %v436, %v437
    %v439 = vrot.slane %v438, 1
    %v440 = vmax.f32 %v438, %v439
    %v441 = vsel %vm370, %v353, -inf
    %v442 = vrot.slane %v441, 4
    %v443 = vmax.f32 %v441, %v442
    %v444 = vrot.slane %v443, 2
    %v445 = vmax.f32 %v443, %v444
    %v446 = vrot.slane %v445, 1
    %v447 = vmax.f32 %v445, %v446
    %v448 = vsel %vm370, %v354, -inf
    %v449 = vrot.slane %v448, 4
    %v450 = vmax.f32 %v448, %v449
    %v451 = vrot.slane %v450, 2
    %v452 = vmax.f32 %v450, %v451
    %v453 = vrot.slane %v452, 1
    %v454 = vmax.f32 %v452, %v453
    %v455 = vsel %vm370, %v341, -inf
    %v456 = vrot.slane %v455, 4
    %v457 = vmax.f32 %v455, %v456
    %v458 = vrot.slane %v457, 2
    %v459 = vmax.f32 %v457, %v458
    %v460 = vrot.slane %v459, 1
    %v461 = vmax.f32 %v459, %v460
    %v462 = vsel %vm370, %v355, -inf
    %v463 = vrot.slane %v462, 4
    %v464 = vmax.f32 %v462, %v463
    %v465 = vrot.slane %v464, 2
    %v466 = vmax.f32 %v464, %v465
    %v467 = vrot.slane %v466, 1
    %v468 = vmax.f32 %v466, %v467
    %v469 = vsel %vm370, %v356, -inf
    %v470 = vrot.slane %v469, 4
    %v471 = vmax.f32 %v469, %v470
    %v472 = vrot.slane %v471, 2
    %v473 = vmax.f32 %v471, %v472
    %v474 = vrot.slane %v473, 1
    %v475 = vmax.f32 %v473, %v474
    %v476 = vsel %vm370, %v357, -inf
    %v477 = vrot.slane %v476, 4
    %v478 = vmax.f32 %v476, %v477
    %v479 = vrot.slane %v478, 2
    %v480 = vmax.f32 %v478, %v479
    %v481 = vrot.slane %v480, 1
    %v482 = vmax.f32 %v480, %v481
    %v483 = vld [vmem:[#allocation2] sm:$0xff]
    %v484 = vld [vmem:[#allocation2 + $0x8] sm:$0xff]
    %v485 = vld [vmem:[#allocation2 + $0x10] sm:$0xff]
    %v486 = vld [vmem:[#allocation2 + $0x18] sm:$0xff]
    %v487 = vld [vmem:[#allocation2 + $0x20] sm:$0xff]
    %v488 = vld [vmem:[#allocation2 + $0x28] sm:$0xff]
    %v489 = vld [vmem:[#allocation2 + $0x30] sm:$0xff]
    %v490 = vld [vmem:[#allocation2 + $0x38] sm:$0xff]
    %v491 = vld [vmem:[#allocation2 + $0x40] sm:$0xff]
    %v492 = vld [vmem:[#allocation2 + $0x48] sm:$0xff]
    %v493 = vld [vmem:[#allocation2 + $0x50] sm:$0xff]
    %v494 = vld [vmem:[#allocation2 + $0x58] sm:$0xff]
    %v495 = vld [vmem:[#allocation2 + $0x60] sm:$0xff]
    %v496 = vld [vmem:[#allocation2 + $0x68] sm:$0xff]
    %v497 = vld [vmem:[#allocation2 + $0x70] sm:$0xff]
    %v498 = vld [vmem:[#allocation2 + $0x78] sm:$0xff]
    %v499 = vld [vmem:[#allocation2 + $0x80] sm:$0xff]
    %v500 = vld [vmem:[#allocation2 + $0x88] sm:$0xff]
    %v501 = vld [vmem:[#allocation2 + $0x90] sm:$0xff]
    %v502 = vld [vmem:[#allocation2 + $0x98] sm:$0xff]
    %v503 = vld [vmem:[#allocation2 + $0xa0] sm:$0xff]
    %v504 = vld [vmem:[#allocation2 + $0xa8] sm:$0xff]
    %v505 = vld [vmem:[#allocation2 + $0xb0] sm:$0xff]
    %v506 = vld [vmem:[#allocation2 + $0xb8] sm:$0xff]
    %v507 = vld [vmem:[%s5] sm:$0x1]
    %vm523 = vcmask 1042434
    %v524 = vsel %vm523, %v384, %v377
    %vm525 = vcmask 1043459
    %v526 = vsel %vm525, %v391, %v524
    %vm527 = vcmask 1044484
    %v528 = vsel %vm527, %v398, %v526
    %vm529 = vcmask 1045509
    %v530 = vsel %vm529, %v405, %v528
    %vm531 = vcmask 1046534
    %v532 = vsel %vm531, %v412, %v530
    %vm533 = vcmask 1047559
    %v534 = vsel %vm533, %v419, %v532
    %vm535 = vcmask 1041409
    %v536 = vsel %vm535, %v433, %v426
    %v537 = vsel %vm523, %v440, %v536
    %v538 = vsel %vm525, %v447, %v537
    %v539 = vsel %vm527, %v454, %v538
    %v540 = vsel %vm529, %v461, %v539
    %v541 = vsel %vm531, %v468, %v540
    %v542 = vsel %vm533, %v475, %v541
    %v545 = vsel %vm145, 0.0, %v534
    %v547 = vsel %vm535, %v391, %v384
    %v548 = vsel %vm523, %v398, %v547
    %v549 = vsel %vm525, %v405, %v548
    %v550 = vsel %vm527, %v412, %v549
    %v551 = vsel %vm529, %v419, %v550
    %v552 = vsel %vm531, %v426, %v551
    %v553 = vsel %vm533, %v433, %v552
    %v554 = vsel %vm535, %v447, %v440
    %v555 = vsel %vm523, %v454, %v554
    %v556 = vsel %vm525, %v461, %v555
    %v557 = vsel %vm527, %v468, %v556
    %v558 = vsel %vm529, %v475, %v557
    %v559 = vsel %vm531, %v482, %v558
    %v562 = vsel %vm158, %v559, 0.0
    %vm563 = vcmp.lt.s32.totalorder %v172, 0
    %v564 = vsub.s32 0, %v172
    %v565 = vsel %vm563, %v564, %v172
    %v566 = vshrl.u32 %v565, 3
    %v567 = vand.u32 %v565, 7
    %v568 = vsub.s32 0, %v567
    %v569 = vsel %vm563, %v568, %v567
    %vm570 = vcmp.lt.s32.totalorder %v173, 0
    %v571 = vsub.s32 0, %v173
    %v572 = vsel %vm570, %v571, %v173
    %v573 = vshrl.u32 %v572, 3
    %v574 = vand.u32 %v572, 7
    %v575 = vsub.s32 0, %v574
    %v576 = vsel %vm570, %v575, %v574
    %vm577 = vcmp.ne.s32.totalorder %v569, 0
    %vm578 = vcmp.ne.s32.totalorder %v576, 0
    %vm579 = vcmp.lt.s32.totalorder %v569, 0
    %vm580 = vcmp.lt.s32.totalorder %v576, 0
    %vm581 = vmand %vm579, %vm577
    %vm582 = vmand %vm580, %vm578
    %v583 = vadd.s32 %v569, 8
    %v584 = vadd.s32 %v576, 8
    %v585 = vsel %vm581, %v583, %v569
    %v586 = vsel %vm582, %v584, %v576
    %vm587 = vcmp.eq.s32.totalorder %v585, 0
    %vm588 = vcmp.eq.s32.totalorder %v586, 0
    %v589 = vsel %vm587, 1, 0
    %v590 = vsel %vm588, 1, 0
    %vm591 = vcmp.eq.s32.totalorder %v589, 1
    %vm592 = vcmp.eq.s32.totalorder %v590, 1
    %v593 = vsel %vm591, 0.0, %v545
    %v594 = vsel %vm592, 0.0, %v542
    %vm595 = vcmp.eq.s32.totalorder %v585, 7
    %vm596 = vcmp.eq.s32.totalorder %v586, 7
    %v597 = vsel %vm595, 1, 0
    %v598 = vsel %vm596, 1, 0
    %vm599 = vcmp.eq.s32.totalorder %v597, 1
    %vm600 = vcmp.eq.s32.totalorder %v598, 1
    %v601 = vsel %vm599, 0.0, %v553
    %v602 = vsel %vm600, 0.0, %v562
    %v603 = vsel %vm535, %v384, %v377
    %v604 = vsel %vm523, %v391, %v603
    %v605 = vsel %vm525, %v398, %v604
    %v606 = vsel %vm527, %v405, %v605
    %v607 = vsel %vm529, %v412, %v606
    %v608 = vsel %vm531, %v419, %v607
    %v609 = vsel %vm533, %v426, %v608
    %v610 = vsel %vm535, %v440, %v433
    %v611 = vsel %vm523, %v447, %v610
    %v612 = vsel %vm525, %v454, %v611
    %v613 = vsel %vm527, %v461, %v612
    %v614 = vsel %vm529, %v468, %v613
    %v615 = vsel %vm531, %v475, %v614
    %v616 = vsel %vm533, %v482, %v615
    %617 = vrot.lane.b32.xlu0 %v609, 64
    %v618 = vpop.permute.xlu0 %617
    %619 = vrot.lane.b32.xlu0 %v616, 64
    %v620 = vpop.permute.xlu0 %619
    %v623 = vsel %vm288, %v593, %v618
    %v624 = vsel %vm288, %v594, %v620
    %v626 = vperm.slane %v507, 0
    %v629 = vsel %vm288, %v601, 0
    %v632 = vsel %vm288, %v602, 0
    %634 = vmatpush.msra.mxu0 %v498
    %635 = vmatpush.msra.mxu0 %v497
    %636 = vmatpush.msra.mxu0 %v496
    %637 = vmatpush.msra.mxu0 %v495
    %638 = vmatpush.msra.mxu0 %v494
    %639 = vmatpush.msra.mxu0 %v493
    %640 = vmatpush.msra.mxu0 %v492
    %641 = vmatpush.msra.mxu0 %v491
    %642 = vmatpush.msra.mxu0 %v490
    %643 = vmatpush.msra.mxu0 %v489
    %644 = vmatpush.msra.mxu0 %v488
    %645 = vmatpush.msra.mxu0 %v487
    %646 = vmatpush.msra.mxu0 %v486
    %647 = vmatpush.msra.mxu0 %v485
    %648 = vmatpush.msra.mxu0 %v484
    %649 = vmatpush.msra.mxu0 %v483
    %650 = vmatmul.f32.gmra.mxu0 %v623
    %v651 = vpop.f32.mrf.mxu0
    %v652 = vadd.f32 %v626, %v651
    %653 = vmatmul.f32.gmra.mxu0 %v624
    %v654 = vpop.f32.mrf.mxu0
    %v655 = vadd.f32 %v626, %v654
    %656 = vdwg.mxu0
    %657 = vmatpush.msra.mxu0 0.0
    %658 = vmatpush.msra.mxu0 0.0
    %659 = vmatpush.msra.mxu0 0.0
    %660 = vmatpush.msra.mxu0 0.0
    %661 = vmatpush.msra.mxu0 0.0
    %662 = vmatpush.msra.mxu0 0.0
    %663 = vmatpush.msra.mxu0 0.0
    %664 = vmatpush.msra.mxu0 0.0
    %665 = vmatpush.msra.mxu0 %v506
    %666 = vmatpush.msra.mxu0 %v505
    %667 = vmatpush.msra.mxu0 %v504
    %668 = vmatpush.msra.mxu0 %v503
    %669 = vmatpush.msra.mxu0 %v502
    %670 = vmatpush.msra.mxu0 %v501
    %671 = vmatpush.msra.mxu0 %v500
    %672 = vmatpush.msra.mxu0 %v499
    %673 = vmatmul.f32.gmra.mxu0 %v629
    %v674 = vpop.f32.mrf.mxu0
    %v675 = vadd.f32 %v652, %v674
    %676 = vmatmul.f32.gmra.mxu0 %v632
    %v677 = vpop.f32.mrf.mxu0
    %v678 = vadd.f32 %v655, %v677
    %679 = vdwg.mxu0
    %v680 = vmax.f32 %v675, 0.0
    %v681 = vmax.f32 %v678, 0.0
    %v684 = vrot.slane %v680, 2
    %v685 = vrot.slane %v680, 4
    %v686 = vrot.slane %v680, 6
    %v687 = vrot.slane %v681, 2
    %v688 = vrot.slane %v681, 4
    %v689 = vrot.slane %v681, 6
    %vm696 = vcmask 1041408
    %v697 = vsel %vm696, %v680, -inf
    %v698 = vrot.slane %v697, 4
    %v699 = vmax.f32 %v697, %v698
    %v700 = vrot.slane %v699, 2
    %v701 = vmax.f32 %v699, %v700
    %v702 = vrot.slane %v701, 1
    %v703 = vmax.f32 %v701, %v702
    %v704 = vsel %vm696, %v684, -inf
    %v705 = vrot.slane %v704, 4
    %v706 = vmax.f32 %v704, %v705
    %v707 = vrot.slane %v706, 2
    %v708 = vmax.f32 %v706, %v707
    %v709 = vrot.slane %v708, 1
    %v710 = vmax.f32 %v708, %v709
    %v711 = vsel %vm696, %v685, -inf
    %v712 = vrot.slane %v711, 4
    %v713 = vmax.f32 %v711, %v712
    %v714 = vrot.slane %v713, 2
    %v715 = vmax.f32 %v713, %v714
    %v716 = vrot.slane %v715, 1
    %v717 = vmax.f32 %v715, %v716
    %v718 = vsel %vm696, %v686, -inf
    %v719 = vrot.slane %v718, 4
    %v720 = vmax.f32 %v718, %v719
    %v721 = vrot.slane %v720, 2
    %v722 = vmax.f32 %v720, %v721
    %v723 = vrot.slane %v722, 1
    %v724 = vmax.f32 %v722, %v723
    %v725 = vsel %vm696, %v681, -inf
    %v726 = vrot.slane %v725, 4
    %v727 = vmax.f32 %v725, %v726
    %v728 = vrot.slane %v727, 2
    %v729 = vmax.f32 %v727, %v728
    %v730 = vrot.slane %v729, 1
    %v731 = vmax.f32 %v729, %v730
    %v732 = vsel %vm696, %v687, -inf
    %v733 = vrot.slane %v732, 4
    %v734 = vmax.f32 %v732, %v733
    %v735 = vrot.slane %v734, 2
    %v736 = vmax.f32 %v734, %v735
    %v737 = vrot.slane %v736, 1
    %v738 = vmax.f32 %v736, %v737
    %v739 = vsel %vm696, %v688, -inf
    %v740 = vrot.slane %v739, 4
    %v741 = vmax.f32 %v739, %v740
    %v742 = vrot.slane %v741, 2
    %v743 = vmax.f32 %v741, %v742
    %v744 = vrot.slane %v743, 1
    %v745 = vmax.f32 %v743, %v744
    %v746 = vsel %vm696, %v689, -inf
    %v747 = vrot.slane %v746, 4
    %v748 = vmax.f32 %v746, %v747
    %v749 = vrot.slane %v748, 2
    %v750 = vmax.f32 %v748, %v749
    %v751 = vrot.slane %v750, 1
    %v752 = vmax.f32 %v750, %v751
    %v761 = vsel %vm535, %v710, %v703
    %v762 = vsel %vm523, %v717, %v761
    %v763 = vsel %vm525, %v724, %v762
    %v764 = vsel %vm527, %v731, %v763
    %v765 = vsel %vm529, %v738, %v764
    %v766 = vsel %vm531, %v745, %v765
    %v767 = vsel %vm533, %v752, %v766
    %v770 = vunpack.c.l.s4 1935823168
    %v771 = vunpack.c.0.s8 %v770
    %v772 = vperm.slane %v767, %v771
    %v773 = vld [vmem:[%s6] sm:$0xff]
    %v774 = vld [vmem:[%s6 + $0x8] sm:$0xff]
    %v775 = vld [vmem:[%s6 + $0x10] sm:$0xff]
    %v776 = vld [vmem:[%s6 + $0x18] sm:$0xff]
    %v777 = vld [vmem:[%s6 + $0x20] sm:$0xff]
    %v778 = vld [vmem:[%s6 + $0x28] sm:$0xff]
    %v779 = vld [vmem:[%s6 + $0x30] sm:$0xff]
    %v780 = vld [vmem:[%s6 + $0x38] sm:$0xff]
    %v781 = vld [vmem:[%s6 + $0x40] sm:$0xff]
    %v782 = vld [vmem:[%s6 + $0x48] sm:$0xff]
    %v783 = vld [vmem:[%s6 + $0x50] sm:$0xff]
    %v784 = vld [vmem:[%s6 + $0x58] sm:$0xff]
    %v785 = vld [vmem:[%s6 + $0x60] sm:$0xff]
    %v786 = vld [vmem:[%s6 + $0x68] sm:$0xff]
    %v787 = vld [vmem:[%s6 + $0x70] sm:$0xff]
    %v788 = vld [vmem:[%s6 + $0x78] sm:$0xff]
    %v789 = vld [vmem:[%s6 + $0x80] sm:$0xff]
    %v790 = vld [vmem:[%s6 + $0x88] sm:$0xff]
    %v791 = vld [vmem:[%s6 + $0x90] sm:$0xff]
    %v792 = vld [vmem:[%s6 + $0x98] sm:$0xff]
    %v793 = vld [vmem:[%s6 + $0xa0] sm:$0xff]
    %v794 = vld [vmem:[%s6 + $0xa8] sm:$0xff]
    %v795 = vld [vmem:[%s6 + $0xb0] sm:$0xff]
    %v796 = vld [vmem:[%s6 + $0xb8] sm:$0xff]
    %v797 = vld [vmem:[%s6 + $0xc0] sm:$0xff]
    %v798 = vld [vmem:[%s6 + $0xc8] sm:$0xff]
    %v799 = vld [vmem:[%s6 + $0xd0] sm:$0xff]
    %v800 = vld [vmem:[%s6 + $0xd8] sm:$0xff]
    %v801 = vld [vmem:[%s6 + $0xe0] sm:$0xff]
    %v802 = vld [vmem:[%s6 + $0xe8] sm:$0xff]
    %v803 = vld [vmem:[%s6 + $0xf0] sm:$0xff]
    %v804 = vld [vmem:[%s6 + $0xf8] sm:$0xff]
    %v805 = vld [vmem:[%s6 + $0x100] sm:$0xff]
    %v806 = vld [vmem:[%s6 + $0x108] sm:$0xff]
    %v807 = vld [vmem:[%s6 + $0x110] sm:$0xff]
    %v808 = vld [vmem:[%s6 + $0x118] sm:$0xff]
    %v809 = vld [vmem:[%s6 + $0x120] sm:$0xff]
    %v810 = vld [vmem:[%s6 + $0x128] sm:$0xff]
    %v811 = vld [vmem:[%s6 + $0x130] sm:$0xff]
    %v812 = vld [vmem:[%s6 + $0x138] sm:$0xff]
    %v813 = vld [vmem:[%s6 + $0x140] sm:$0xff]
    %v814 = vld [vmem:[%s6 + $0x148] sm:$0xff]
    %v815 = vld [vmem:[%s6 + $0x150] sm:$0xff]
    %v816 = vld [vmem:[%s6 + $0x158] sm:$0xff]
    %v817 = vld [vmem:[%s6 + $0x160] sm:$0xff]
    %v818 = vld [vmem:[%s6 + $0x168] sm:$0xff]
    %v819 = vld [vmem:[%s6 + $0x170] sm:$0xff]
    %v820 = vld [vmem:[%s6 + $0x178] sm:$0xff]
    %v821 = vld [vmem:[%s6 + $0x180] sm:$0xff]
    %v822 = vld [vmem:[%s6 + $0x188] sm:$0xff]
    %v823 = vld [vmem:[%s6 + $0x190] sm:$0xff]
    %v824 = vld [vmem:[%s6 + $0x198] sm:$0xff]
    %v825 = vld [vmem:[%s6 + $0x1a0] sm:$0xff]
    %v826 = vld [vmem:[%s6 + $0x1a8] sm:$0xff]
    %v827 = vld [vmem:[%s6 + $0x1b0] sm:$0xff]
    %v828 = vld [vmem:[%s6 + $0x1b8] sm:$0xff]
    %v829 = vld [vmem:[%s6 + $0x1c0] sm:$0xff]
    %v830 = vld [vmem:[%s6 + $0x1c8] sm:$0xff]
    %v831 = vld [vmem:[%s6 + $0x1d0] sm:$0xff]
    %v832 = vld [vmem:[%s6 + $0x1d8] sm:$0xff]
    %v833 = vld [vmem:[%s6 + $0x1e0] sm:$0xff]
    %v834 = vld [vmem:[%s6 + $0x1e8] sm:$0xff]
    %v835 = vld [vmem:[%s6 + $0x1f0] sm:$0xff]
    %v836 = vld [vmem:[%s6 + $0x1f8] sm:$0xff]
    %v837 = vld [vmem:[%s7] sm:$0x1]
    %v839 = vperm.slane %v837, 0
    %842 = vst [vmem:[#allocation1] ss:$4 sm:$0xff] %v772
    %v843 = vld.sshfl [vmem:[#allocation1] sm:$0xff pattern:$0x73625140]
    %v844 = vld.sshfl [vmem:[#allocation1 + $0x8] sm:$0xff pattern:$0x73625140]
    %v845 = vld.sshfl [vmem:[#allocation1 + $0x10] sm:$0xff pattern:$0x73625140]
    %v846 = vld.sshfl [vmem:[#allocation1 + $0x18] sm:$0xff pattern:$0x73625140]
    %851 = vmatpush.msra.mxu0 %v788
    %852 = vmatpush.msra.mxu0 %v787
    %853 = vmatpush.msra.mxu0 %v786
    %854 = vmatpush.msra.mxu0 %v785
    %855 = vmatpush.msra.mxu0 %v784
    %856 = vmatpush.msra.mxu0 %v783
    %857 = vmatpush.msra.mxu0 %v782
    %858 = vmatpush.msra.mxu0 %v781
    %859 = vmatpush.msra.mxu0 %v780
    %860 = vmatpush.msra.mxu0 %v779
    %861 = vmatpush.msra.mxu0 %v778
    %862 = vmatpush.msra.mxu0 %v777
    %863 = vmatpush.msra.mxu0 %v776
    %864 = vmatpush.msra.mxu0 %v775
    %865 = vmatpush.msra.mxu0 %v774
    %866 = vmatpush.msra.mxu0 %v773
    %867 = vmatmul.f32.gmra.mxu0 %v843
    %v868 = vpop.f32.mrf.mxu0
    %v869 = vadd.f32 %v839, %v868
    %870 = vdwg.mxu0
    %871 = vmatpush.msra.mxu0 %v804
    %872 = vmatpush.msra.mxu0 %v803
    %873 = vmatpush.msra.mxu0 %v802
    %874 = vmatpush.msra.mxu0 %v801
    %875 = vmatpush.msra.mxu0 %v800
    %876 = vmatpush.msra.mxu0 %v799
    %877 = vmatpush.msra.mxu0 %v798
    %878 = vmatpush.msra.mxu0 %v797
    %879 = vmatpush.msra.mxu0 %v796
    %880 = vmatpush.msra.mxu0 %v795
    %881 = vmatpush.msra.mxu0 %v794
    %882 = vmatpush.msra.mxu0 %v793
    %883 = vmatpush.msra.mxu0 %v792
    %884 = vmatpush.msra.mxu0 %v791
    %885 = vmatpush.msra.mxu0 %v790
    %886 = vmatpush.msra.mxu0 %v789
    %887 = vmatmul.f32.gmra.mxu0 %v844
    %v888 = vpop.f32.mrf.mxu0
    %v889 = vadd.f32 %v869, %v888
    %890 = vdwg.mxu0
    %891 = vmatpush.msra.mxu0 %v820
    %892 = vmatpush.msra.mxu0 %v819
    %893 = vmatpush.msra.mxu0 %v818
    %894 = vmatpush.msra.mxu0 %v817
    %895 = vmatpush.msra.mxu0 %v816
    %896 = vmatpush.msra.mxu0 %v815
    %897 = vmatpush.msra.mxu0 %v814
    %898 = vmatpush.msra.mxu0 %v813
    %899 = vmatpush.msra.mxu0 %v812
    %900 = vmatpush.msra.mxu0 %v811
    %901 = vmatpush.msra.mxu0 %v810
    %902 = vmatpush.msra.mxu0 %v809
    %903 = vmatpush.msra.mxu0 %v808
    %904 = vmatpush.msra.mxu0 %v807
    %905 = vmatpush.msra.mxu0 %v806
    %906 = vmatpush.msra.mxu0 %v805
    %907 = vmatmul.f32.gmra.mxu0 %v845
    %v908 = vpop.f32.mrf.mxu0
    %v909 = vadd.f32 %v889, %v908
    %910 = vdwg.mxu0
    %911 = vmatpush.msra.mxu0 %v836
    %912 = vmatpush.msra.mxu0 %v835
    %913 = vmatpush.msra.mxu0 %v834
    %914 = vmatpush.msra.mxu0 %v833
    %915 = vmatpush.msra.mxu0 %v832
    %916 = vmatpush.msra.mxu0 %v831
    %917 = vmatpush.msra.mxu0 %v830
    %918 = vmatpush.msra.mxu0 %v829
    %919 = vmatpush.msra.mxu0 %v828
    %920 = vmatpush.msra.mxu0 %v827
    %921 = vmatpush.msra.mxu0 %v826
    %922 = vmatpush.msra.mxu0 %v825
    %923 = vmatpush.msra.mxu0 %v824
    %924 = vmatpush.msra.mxu0 %v823
    %925 = vmatpush.msra.mxu0 %v822
    %926 = vmatpush.msra.mxu0 %v821
    %927 = vmatmul.f32.gmra.mxu0 %v846
    %v928 = vpop.f32.mrf.mxu0
    %v929 = vadd.f32 %v909, %v928
    %930 = vdwg.mxu0
    %v931 = vmax.f32 %v929, 0.0
    %v932 = vld [vmem:[%s8] sm:$0xff]
    %v933 = vld [vmem:[%s8 + $0x8] sm:$0xff]
    %v934 = vld [vmem:[%s8 + $0x10] sm:$0xff]
    %v935 = vld [vmem:[%s8 + $0x18] sm:$0xff]
    %v936 = vld [vmem:[%s8 + $0x20] sm:$0xff]
    %v937 = vld [vmem:[%s8 + $0x28] sm:$0xff]
    %v938 = vld [vmem:[%s8 + $0x30] sm:$0xff]
    %v939 = vld [vmem:[%s8 + $0x38] sm:$0xff]
    %v940 = vld [vmem:[%s8 + $0x40] sm:$0xff]
    %v941 = vld [vmem:[%s8 + $0x48] sm:$0xff]
    %v942 = vld [vmem:[%s8 + $0x50] sm:$0xff]
    %v943 = vld [vmem:[%s8 + $0x58] sm:$0xff]
    %v944 = vld [vmem:[%s8 + $0x60] sm:$0xff]
    %v945 = vld [vmem:[%s8 + $0x68] sm:$0xff]
    %v946 = vld [vmem:[%s8 + $0x70] sm:$0xff]
    %v947 = vld [vmem:[%s8 + $0x78] sm:$0xff]
    %v948 = vld [vmem:[%s9] sm:$0x1]
    %v950 = vperm.slane %v948, 0
    %952 = vmatpush.msra.mxu0 %v947
    %953 = vmatpush.msra.mxu0 %v946
    %954 = vmatpush.msra.mxu0 %v945
    %955 = vmatpush.msra.mxu0 %v944
    %956 = vmatpush.msra.mxu0 %v943
    %957 = vmatpush.msra.mxu0 %v942
    %958 = vmatpush.msra.mxu0 %v941
    %959 = vmatpush.msra.mxu0 %v940
    %960 = vmatpush.msra.mxu0 %v939
    %961 = vmatpush.msra.mxu0 %v938
    %962 = vmatpush.msra.mxu0 %v937
    %963 = vmatpush.msra.mxu0 %v936
    %964 = vmatpush.msra.mxu0 %v935
    %965 = vmatpush.msra.mxu0 %v934
    %966 = vmatpush.msra.mxu0 %v933
    %967 = vmatpush.msra.mxu0 %v932
    %968 = vmatmul.f32.gmra.mxu0 %v931
    %v969 = vpop.f32.mrf.mxu0
    %v970 = vadd.f32 %v950, %v969
    %971 = vdwg.mxu0
    %972 = vst [vmem:[#allocation5] sm:$0x3] %v970
    // Predicated region
    $region46: #{embedding_conv_net.1} parent=1 // pred_check
      _
    $region47: #{embedding_conv_net.1} parent=1 // pred_check_branch
      %974 = sbr.rel (0) target = $region49
    $region48: #{embedding_conv_net.1} parent=1 // pred_region
      %976 = vsyncadd [#allocation4], 0
      %s978 = sshll.u32 [#allocation5], 4
      %s979 = int_to_ptr.vmem [resolvable:$true] %s978
      %s980 = sshll.u32 %s10, 4
      %s981 = int_to_ptr.hbm [resolvable:$true] %s980
      %983 = dma.vmem_to_hbm [thread:$0]  %s979, 32, %s981, [#allocation4]
    $region49: #{embedding_conv_net.1} parent=1 // pred_fallthru
      _
    // Predicated region
    $region50: #{embedding_conv_net.1} parent=1 // pred_check
      _
    $region51: #{embedding_conv_net.1} parent=1 // pred_check_branch
      %985 = sbr.rel (0) target = $region53
    $region52: #{embedding_conv_net.1} parent=1 // pred_region
      %987 = dma.done [#allocation4], 32
    $region53: #{embedding_conv_net.1} parent=1 // pred_fallthru
      _
    %988 = vsyncpa [#allocation3], 1
    %989 = vsyncpa [#allocation4], 1

</llo_original>
